<compile_context>
chip_gen: v7x
topology: tpu7x:2x2x1
jax: 0.10.0
libtpu: 0.0.40
codegen_flags: <defaults>
</compile_context>

<pallas_src>
import jax
import jax.numpy as jnp
from jax.experimental import pallas as pl
from jax.experimental.pallas import tpu as pltpu  # noqa: F401  (referenced in TODOs)

# ---- small synthetic shapes --------------------------------------------------
N, C, H, W = 2, 4, 16, 16          # batch, channels, spatial
F = 32                             # backbone feature channels
K = 8                              # roi-head classes
HW = H * W
M = N * HW                         # total pixel count
HEAD_ROWS = 16                     # padded merged-head rows (dec 0:4, obj 4, cls 8:16)


# ---- fused Pallas kernel -----------------------------------------------------

def _fused_rcnn_kernel(x_ref, aux_ref, wenc_t_ref, whead_t_ref, out_ref):
    """Whole forward pass in one kernel (grid=()).

    x_ref      : (C, N*HW)       raw images, channels on sublanes, N*HW on lanes
    aux_ref    : (16, 3)         packed constants: col0[:C]=1/std, col1[:C]=-mean/std,
                                 col2[:K]=cls bias
    wenc_t_ref : (F, C)          encoder (1x1 conv) transposed
    whead_t_ref: (16, F)         [wdec.T ; wobj.T ; 0 ; wcls.T] merged + padded head
    out_ref    : (1, 4)          [distortion_sum, rate_sum, rpn_sum, cls_sum]
    """
    x = x_ref[...]                                          # (C, N*HW)
    scale = aux_ref[0:C, 0:1]                               # (C, 1)
    offset = aux_ref[0:C, 1:2]                              # (C, 1)
    bcls = aux_ref[0:K, 2:3]                                # (K, 1)
    wenc_t = wenc_t_ref[...]                                # (F, C)
    whead_t = whead_t_ref[...]                              # (16, F)

    # --- preprocess_image: per-channel normalization (all N images at once) --
    xn = x * scale + offset                                 # (C, N*HW)

    # --- backbone: 1x1 conv (channel contraction), one MXU pass over N*HW ----
    feat = jnp.dot(wenc_t, xn,
                   preferred_element_type=jnp.float32)      # (F, N*HW)

    # --- merged heads: decoder | objectness | cls, one MXU pass --------------
    head = jnp.dot(whead_t, feat,
                   preferred_element_type=jnp.float32)      # (16, N*HW)
    recon = head[0:C, :]                                    # (C, N*HW)
    obj = head[C:C + 1, :]                                  # (1, N*HW)
    q = head[8:8 + K, :]                                    # (K, N*HW) tile-aligned

    # rate-distortion terms (synthetic analysis/synthesis transform)
    dist = jnp.sum((recon - xn) ** 2)[None, None]           # (1, 1)
    rate = jnp.sum(jnp.log2(1.0 + feat * feat))[None, None]  # (1, 1)

    # --- proposal_generator: dense objectness + softplus (BCE vs 0 labels) ---
    sp = jnp.maximum(obj, 0.0) + jnp.log1p(jnp.exp(-jnp.abs(obj)))
    rpn = jnp.sum(sp)[None, None]                           # (1, 1)

    # --- roi_heads: per-image global-pooled classification + logsumexp -------
    cls_acc = jnp.zeros((1, 1), jnp.float32)
    for n in range(N):                                      # N=2, static unroll
        q_n = q[:, n * HW:(n + 1) * HW]                     # 128-aligned lane slice
        logits = jnp.mean(q_n, axis=-1, keepdims=True) + bcls   # (K, 1)
        m = jnp.max(logits)                                 # scalar
        s = jnp.sum(jnp.exp(logits - m))[None, None]        # (1, 1)
        cls_acc = cls_acc + (m + jnp.log(s))                # logsumexp_n

    # single packed write: one store, one writeback DMA
    out_ref[...] = jnp.concatenate([dist, rate, rpn, cls_acc], axis=-1)


# ---- parameter preparation (runs once, outside the per-call jit path) -------

def prepare_params(params):
    mean = params["pixel_mean"].astype(jnp.float32)
    std = params["pixel_std"].astype(jnp.float32)

    aux = jnp.zeros((16, 3), jnp.float32)
    aux = aux.at[0:C, 0].set(1.0 / std)                     # scale
    aux = aux.at[0:C, 1].set(-mean / std)                   # offset
    aux = aux.at[0:K, 2].set(params["bcls"].reshape(K))     # cls bias

    wenc_t = params["wenc"].T.astype(jnp.float32)           # (F, C)

    whead_t = jnp.zeros((HEAD_ROWS, F), jnp.float32)
    whead_t = whead_t.at[0:C, :].set(params["wdec"].T)      # decoder rows 0:4
    whead_t = whead_t.at[C:C + 1, :].set(params["wobj"].T)  # objectness row 4
    whead_t = whead_t.at[8:8 + K, :].set(params["wcls"].T)  # cls rows 8:16

    return {"aux": aux, "wenc_t": wenc_t, "whead_t": whead_t}


# ---- forward wrapper (the nn.Module) -----------------------------------------

def generalized_rcnn_with_rate_forward(images, prep):
    """Training-path forward: returns (losses dict, distortion, rate)."""
    # NCHW -> (C, N*HW): tiny (~8 KiB) transpose so both matmuls batch over N.
    x2d = jnp.transpose(images.astype(jnp.float32), (1, 0, 2, 3)).reshape(C, N * HW)

    sums = pl.pallas_call(
        _fused_rcnn_kernel,
        out_shape=jax.ShapeDtypeStruct((1, 4), jnp.float32),
    )(x2d, prep["aux"], prep["wenc_t"], prep["whead_t"])

    dist_s, rate_s, rpn_s, cls_s = sums[0, 0], sums[0, 1], sums[0, 2], sums[0, 3]

    distortion = dist_s / (M * C)
    rate = rate_s / (M * F)
    losses = {
        # NOTE: synthetic stand-ins — roi loss is mean(logsumexp) without a
        # target-logit term; rpn loss is softplus (BCE vs. all-zero labels).
        "loss_cls": cls_s / N,
        "loss_rpn_cls": rpn_s / M,
    }
    return losses, distortion, rate


# ---- main --------------------------------------------------------------------

if __name__ == "__main__":
    key = jax.random.PRNGKey(0)
    k_img, k_enc, k_dec, k_obj, k_cls = jax.random.split(key, 5)

    # batched_inputs -> one stacked NCHW image tensor (all images same size)
    images = jax.random.uniform(k_img, (N, C, H, W), jnp.float32) * 255.0

    params = {
        # registered buffers (per-channel mean / std)
        "pixel_mean": jnp.array([103.53, 116.28, 123.675, 110.0], jnp.float32),
        "pixel_std": jnp.array([57.375, 57.12, 58.395, 57.5], jnp.float32),
        # synthetic backbone (analysis / synthesis transforms)
        "wenc": jax.random.normal(k_enc, (C, F), jnp.float32) * 0.1,
        "wdec": jax.random.normal(k_dec, (F, C), jnp.float32) * 0.1,
        # proposal generator (objectness head)
        "wobj": jax.random.normal(k_obj, (F, 1), jnp.float32) * 0.1,
        # roi head (classification)
        "wcls": jax.random.normal(k_cls, (F, K), jnp.float32) * 0.1,
        "bcls": jnp.zeros((1, K), jnp.float32),
    }

    prep = prepare_params(params)  # hoisted out of the per-call path
    fwd = jax.jit(generalized_rcnn_with_rate_forward)

    losses, distortion, rate = fwd(images, prep)
    jax.block_until_ready((losses, distortion, rate))

    assert set(losses.keys()) == {"loss_cls", "loss_rpn_cls"}
    for v in (losses["loss_cls"], losses["loss_rpn_cls"], distortion, rate):
        assert jnp.isfinite(v)
    print("KERNEL_OK")
</pallas_src>

<mosaic_0001>
module attributes {stable_mosaic.version = 11 : i64} {
  func.func @_fused_rcnn_kernel(%arg0: memref<4x512xf32, #tpu.memory_space<vmem>>, %arg1: memref<16x3xf32, #tpu.memory_space<vmem>>, %arg2: memref<32x4xf32, #tpu.memory_space<vmem>>, %arg3: memref<16x32xf32, #tpu.memory_space<vmem>>, %arg4: memref<1x4xf32, #tpu.memory_space<vmem>>) attributes {dimension_semantics = [], scalar_prefetch = 0 : i64, scratch_operands = 0 : i64, tpu.core_type = #tpu.core_type<tc>} {
    %c0 = arith.constant 0 : index
    %c0_0 = arith.constant 0 : index
    %0 = vector.load %arg0[%c0, %c0_0] : memref<4x512xf32, #tpu.memory_space<vmem>>, vector<4x512xf32>
    %c0_1 = arith.constant 0 : index
    %c0_2 = arith.constant 0 : index
    %1 = vector.load %arg1[%c0_1, %c0_2] : memref<16x3xf32, #tpu.memory_space<vmem>>, vector<4x1xf32>
    %c0_3 = arith.constant 0 : index
    %c1 = arith.constant 1 : index
    %2 = vector.load %arg1[%c0_3, %c1] : memref<16x3xf32, #tpu.memory_space<vmem>>, vector<4x1xf32>
    %c0_4 = arith.constant 0 : index
    %c2 = arith.constant 2 : index
    %3 = vector.load %arg1[%c0_4, %c2] : memref<16x3xf32, #tpu.memory_space<vmem>>, vector<8x1xf32>
    %c0_5 = arith.constant 0 : index
    %c0_6 = arith.constant 0 : index
    %4 = vector.load %arg2[%c0_5, %c0_6] : memref<32x4xf32, #tpu.memory_space<vmem>>, vector<32x4xf32>
    %c0_7 = arith.constant 0 : index
    %c0_8 = arith.constant 0 : index
    %5 = vector.load %arg3[%c0_7, %c0_8] : memref<16x32xf32, #tpu.memory_space<vmem>>, vector<16x32xf32>
    %6 = vector.broadcast %1 : vector<4x1xf32> to vector<4x512xf32>
    %7 = arith.mulf %0, %6 : vector<4x512xf32>
    %8 = vector.broadcast %2 : vector<4x1xf32> to vector<4x512xf32>
    %9 = arith.addf %7, %8 : vector<4x512xf32>
    %cst = arith.constant dense<0.000000e+00> : vector<32x512xf32>
    %10 = tpu.matmul %4, %9, %cst {dimension_numbers = #tpu.dot_dimension_numbers<[1], [0], [0], [1], [0, 0, 1, 1], [], []>} : vector<32x4xf32>, vector<4x512xf32>, vector<32x512xf32> -> vector<32x512xf32>
    %cst_9 = arith.constant dense<0.000000e+00> : vector<16x512xf32>
    %11 = tpu.matmul %5, %10, %cst_9 {dimension_numbers = #tpu.dot_dimension_numbers<[1], [0], [0], [1], [0, 0, 1, 1], [], []>} : vector<16x32xf32>, vector<32x512xf32>, vector<16x512xf32> -> vector<16x512xf32>
    %12 = vector.extract_strided_slice %11 {offsets = [0, 0], sizes = [4, 512], strides = [1, 1]} : vector<16x512xf32> to vector<4x512xf32>
    %13 = vector.extract_strided_slice %11 {offsets = [4, 0], sizes = [1, 512], strides = [1, 1]} : vector<16x512xf32> to vector<1x512xf32>
    %14 = vector.extract_strided_slice %11 {offsets = [8, 0], sizes = [8, 512], strides = [1, 1]} : vector<16x512xf32> to vector<8x512xf32>
    %15 = arith.subf %12, %9 : vector<4x512xf32>
    %16 = arith.mulf %15, %15 : vector<4x512xf32>
    %17 = vector.shape_cast %16 : vector<4x512xf32> to vector<1x4x512xf32>
    %cst_10 = arith.constant dense<0.000000e+00> : vector<1xf32>
    %18 = vector.multi_reduction <add>, %17, %cst_10 [1, 2] : vector<1x4x512xf32> to vector<1xf32>
    %19 = vector.shape_cast %18 : vector<1xf32> to vector<1x1x1xf32>
    %20 = vector.extract %19[0, 0, 0] : f32 from vector<1x1x1xf32>
    %21 = vector.broadcast %20 : f32 to vector<1x1xf32>
    %22 = arith.mulf %10, %10 : vector<32x512xf32>
    %cst_11 = arith.constant 1.000000e+00 : f32
    %23 = vector.broadcast %cst_11 : f32 to vector<32x512xf32>
    %24 = arith.addf %23, %22 : vector<32x512xf32>
    %25 = math.log %24 : vector<32x512xf32>
    %cst_12 = arith.constant 2.000000e+00 : f32
    %26 = math.log %cst_12 : f32
    %27 = vector.broadcast %26 : f32 to vector<32x512xf32>
    %28 = arith.divf %25, %27 : vector<32x512xf32>
    %29 = vector.shape_cast %28 : vector<32x512xf32> to vector<1x32x512xf32>
    %cst_13 = arith.constant dense<0.000000e+00> : vector<1xf32>
    %30 = vector.multi_reduction <add>, %29, %cst_13 [1, 2] : vector<1x32x512xf32> to vector<1xf32>
    %31 = vector.shape_cast %30 : vector<1xf32> to vector<1x1x1xf32>
    %32 = vector.extract %31[0, 0, 0] : f32 from vector<1x1x1xf32>
    %33 = vector.broadcast %32 : f32 to vector<1x1xf32>
    %cst_14 = arith.constant 0.000000e+00 : f32
    %34 = vector.broadcast %cst_14 : f32 to vector<1x512xf32>
    %35 = arith.maximumf %13, %34 : vector<1x512xf32>
    %36 = math.absf %13 : vector<1x512xf32>
    %cst_15 = arith.constant 0.000000e+00 : f32
    %37 = vector.broadcast %cst_15 : f32 to vector<1x512xf32>
    %38 = arith.subf %37, %36 : vector<1x512xf32>
    %39 = math.exp %38 : vector<1x512xf32>
    %40 = math.log1p %39 : vector<1x512xf32>
    %41 = arith.addf %35, %40 : vector<1x512xf32>
    %42 = vector.shape_cast %41 : vector<1x512xf32> to vector<1x1x512xf32>
    %cst_16 = arith.constant dense<0.000000e+00> : vector<1xf32>
    %43 = vector.multi_reduction <add>, %42, %cst_16 [1, 2] : vector<1x1x512xf32> to vector<1xf32>
    %44 = vector.shape_cast %43 : vector<1xf32> to vector<1x1x1xf32>
    %45 = vector.extract %44[0, 0, 0] : f32 from vector<1x1x1xf32>
    %46 = vector.broadcast %45 : f32 to vector<1x1xf32>
    %cst_17 = arith.constant 0.000000e+00 : f32
    %47 = vector.broadcast %cst_17 : f32 to vector<1x1xf32>
    %48 = vector.extract_strided_slice %14 {offsets = [0, 0], sizes = [8, 256], strides = [1, 1]} : vector<8x512xf32> to vector<8x256xf32>
    %cst_18 = arith.constant dense<0.000000e+00> : vector<8xf32>
    %49 = vector.multi_reduction <add>, %48, %cst_18 [1] : vector<8x256xf32> to vector<8xf32>
    %50 = vector.shape_cast %49 : vector<8xf32> to vector<8x1xf32>
    %cst_19 = arith.constant 2.560000e+02 : f32
    %51 = vector.broadcast %cst_19 : f32 to vector<8x1xf32>
    %52 = arith.divf %50, %51 : vector<8x1xf32>
    %53 = arith.addf %52, %3 : vector<8x1xf32>
    %54 = vector.shape_cast %53 : vector<8x1xf32> to vector<1x8x1xf32>
    %cst_20 = arith.constant dense<0xFF800000> : vector<1xf32>
    %55 = vector.multi_reduction <maximumf>, %54, %cst_20 [1, 2] : vector<1x8x1xf32> to vector<1xf32>
    %56 = vector.shape_cast %55 : vector<1xf32> to vector<1x1x1xf32>
    %57 = vector.extract %56[0, 0, 0] : f32 from vector<1x1x1xf32>
    %58 = vector.broadcast %57 : f32 to vector<8x1xf32>
    %59 = arith.subf %53, %58 : vector<8x1xf32>
    %60 = math.exp %59 : vector<8x1xf32>
    %61 = vector.shape_cast %60 : vector<8x1xf32> to vector<1x8x1xf32>
    %cst_21 = arith.constant dense<0.000000e+00> : vector<1xf32>
    %62 = vector.multi_reduction <add>, %61, %cst_21 [1, 2] : vector<1x8x1xf32> to vector<1xf32>
    %63 = vector.shape_cast %62 : vector<1xf32> to vector<1x1x1xf32>
    %64 = vector.extract %63[0, 0, 0] : f32 from vector<1x1x1xf32>
    %65 = vector.broadcast %64 : f32 to vector<1x1xf32>
    %66 = math.log %65 : vector<1x1xf32>
    %67 = vector.broadcast %57 : f32 to vector<1x1xf32>
    %68 = arith.addf %67, %66 : vector<1x1xf32>
    %69 = arith.addf %47, %68 : vector<1x1xf32>
    %70 = vector.extract_strided_slice %14 {offsets = [0, 256], sizes = [8, 256], strides = [1, 1]} : vector<8x512xf32> to vector<8x256xf32>
    %cst_22 = arith.constant dense<0.000000e+00> : vector<8xf32>
    %71 = vector.multi_reduction <add>, %70, %cst_22 [1] : vector<8x256xf32> to vector<8xf32>
    %72 = vector.shape_cast %71 : vector<8xf32> to vector<8x1xf32>
    %cst_23 = arith.constant 2.560000e+02 : f32
    %73 = vector.broadcast %cst_23 : f32 to vector<8x1xf32>
    %74 = arith.divf %72, %73 : vector<8x1xf32>
    %75 = arith.addf %74, %3 : vector<8x1xf32>
    %76 = vector.shape_cast %75 : vector<8x1xf32> to vector<1x8x1xf32>
    %cst_24 = arith.constant dense<0xFF800000> : vector<1xf32>
    %77 = vector.multi_reduction <maximumf>, %76, %cst_24 [1, 2] : vector<1x8x1xf32> to vector<1xf32>
    %78 = vector.shape_cast %77 : vector<1xf32> to vector<1x1x1xf32>
    %79 = vector.extract %78[0, 0, 0] : f32 from vector<1x1x1xf32>
    %80 = vector.broadcast %79 : f32 to vector<8x1xf32>
    %81 = arith.subf %75, %80 : vector<8x1xf32>
    %82 = math.exp %81 : vector<8x1xf32>
    %83 = vector.shape_cast %82 : vector<8x1xf32> to vector<1x8x1xf32>
    %cst_25 = arith.constant dense<0.000000e+00> : vector<1xf32>
    %84 = vector.multi_reduction <add>, %83, %cst_25 [1, 2] : vector<1x8x1xf32> to vector<1xf32>
    %85 = vector.shape_cast %84 : vector<1xf32> to vector<1x1x1xf32>
    %86 = vector.extract %85[0, 0, 0] : f32 from vector<1x1x1xf32>
    %87 = vector.broadcast %86 : f32 to vector<1x1xf32>
    %88 = math.log %87 : vector<1x1xf32>
    %89 = vector.broadcast %79 : f32 to vector<1x1xf32>
    %90 = arith.addf %89, %88 : vector<1x1xf32>
    %91 = arith.addf %69, %90 : vector<1x1xf32>
    %92 = tpu.concatenate %21, %33, %46, %91 in 1 : vector<1x1xf32>, vector<1x1xf32>, vector<1x1xf32>, vector<1x1xf32> -> vector<1x4xf32>
    %c0_26 = arith.constant 0 : index
    %c0_27 = arith.constant 0 : index
    %93 = vector.load %arg4[%c0_26, %c0_27] : memref<1x4xf32, #tpu.memory_space<vmem>>, vector<1x4xf32>
    tpu.vector_store %arg4[%c0_26, %c0_27], %92 {strides = array<i32>} : memref<1x4xf32, #tpu.memory_space<vmem>>, vector<1x4xf32>,
    return
  }
}

</mosaic_0001>

<llo_original>
// kernel: generalized_rcnn_with_rate_forward.1
$region0: #{generalized_rcnn_with_rate_forward.1}
  #allocation0 [shape = 'u32[]', space=smem, size = 0x4, offset = 0x4, fixed_abs, tag = 'smem constant byte address 0x4 - core index']
  #allocation1 [shape = 'u32[144,128]{1,0:T(1,128)}', space=vmem, size = 0x12000, scoped, tag = 'internal scratch']
  %s0 = inlined_call_operand.vmem [shape: f32[4,512], index: 0, kind: input, shape index: {}]
  %s1 = inlined_call_operand.vmem [shape: f32[16,3], index: 1, kind: input, shape index: {}]
  %s2 = inlined_call_operand.vmem [shape: f32[32,4], index: 2, kind: input, shape index: {}]
  %s3 = inlined_call_operand.vmem [shape: f32[16,32], index: 3, kind: input, shape index: {}]
  %s4 = inlined_call_operand.vmem [shape: f32[1,4], index: 4, kind: output, shape index: {}]
  %s5 = sld [smem:[#allocation0]]
  $region26: #{generalized_rcnn_with_rate_forward.1} parent=0
    _
  %s7 = ssub.s32 1, %s5
  %s8 = scalar_select 0, %s7, %s5
  // Predicated region
  $region2: #{generalized_rcnn_with_rate_forward.1} parent=0 // pred_check
    _
  $region3: #{generalized_rcnn_with_rate_forward.1} parent=0 // pred_check_branch
    %10 = sbr.rel (0) target = $region5
  $region4: #{generalized_rcnn_with_rate_forward.1} parent=0 // pred_region
    _
  $region5: #{generalized_rcnn_with_rate_forward.1} parent=0 // pred_fallthru
    _
  // Predicated region
  $region6: #{generalized_rcnn_with_rate_forward.1} parent=0 // pred_check
    _
  $region7: #{generalized_rcnn_with_rate_forward.1} parent=0 // pred_check_branch
    %12 = sbr.rel (0) target = $region9
  $region8: #{generalized_rcnn_with_rate_forward.1} parent=0 // pred_region
    _
  $region9: #{generalized_rcnn_with_rate_forward.1} parent=0 // pred_fallthru
    _
  // Predicated region
  $region10: #{generalized_rcnn_with_rate_forward.1} parent=0 // pred_check
    _
  $region11: #{generalized_rcnn_with_rate_forward.1} parent=0 // pred_check_branch
    %14 = sbr.rel (0) target = $region13
  $region12: #{generalized_rcnn_with_rate_forward.1} parent=0 // pred_region
    _
  $region13: #{generalized_rcnn_with_rate_forward.1} parent=0 // pred_fallthru
    _
  // Predicated region
  $region14: #{generalized_rcnn_with_rate_forward.1} parent=0 // pred_check
    _
  $region15: #{generalized_rcnn_with_rate_forward.1} parent=0 // pred_check_branch
    %16 = sbr.rel (0) target = $region17
  $region16: #{generalized_rcnn_with_rate_forward.1} parent=0 // pred_region
    _
  $region17: #{generalized_rcnn_with_rate_forward.1} parent=0 // pred_fallthru
    _
  %v17 = vld [vmem:[%s0] sm:$0xff]
  %v18 = vld [vmem:[%s0 + $0x8] sm:$0xff]
  %v19 = vld [vmem:[%s1] sm:$0xf]
  %v20 = vld [vmem:[%s1] sm:$0xff]
  %v21 = vld [vmem:[%s2] sm:$0xff]
  %v22 = vld [vmem:[%s2 + $0x8] sm:$0xff]
  %v23 = vld [vmem:[%s2 + $0x10] sm:$0xff]
  %v24 = vld [vmem:[%s2 + $0x18] sm:$0xff]
  %v25 = vld [vmem:[%s3] sm:$0xff]
  %v26 = vld [vmem:[%s3 + $0x8] sm:$0xff]
  %28 = vset.pattern.permute.xlu0 0
  %29 = vperm.xlu0 %28, %v19
  %v30 = vpop.permute.xlu0 %29
  %v32 = vunpack.c.l.s4 839922192
  %v33 = vunpack.c.0.s8 %v32
  %v34 = vlaneseq
  %v35 = vshrl.u32 %v34, 7
  %v36 = vsub.s32 %v33, %v35
  %v37 = vrot.slane %v30, %v36
  %v39 = vmul.f32 %v17, %v37
  %v40 = vmul.f32 %v18, %v37
  %41 = vset.pattern.permute.xlu0 1
  %42 = vperm.xlu0 %41, %v19
  %v43 = vpop.permute.xlu0 %42
  %v45 = vunpack.c.l.s4 839922192
  %v46 = vunpack.c.0.s8 %v45
  %v47 = vlaneseq
  %v48 = vshrl.u32 %v47, 7
  %v49 = vsub.s32 %v46, %v48
  %v50 = vrot.slane %v43, %v49
  %v52 = vadd.f32 %v39, %v50
  %v53 = vadd.f32 %v40, %v50
  %v56 = vcombine.high %v52, %v52
  %v57 = vcombine.high %v53, %v53
  %vm58 = vcmask 31744
  %v60 = vsel %vm58, %v21, 0
  %v63 = vsel %vm58, %v22, 0
  %v66 = vsel %vm58, %v23, 0
  %v69 = vsel %vm58, %v24, 0
  %vm71 = vcmask 1043456
  %v72 = vsel %vm71, %v52, 0
  %v74 = vsel %vm71, %v56, 0
  %v76 = vsel %vm71, %v53, 0
  %v78 = vsel %vm71, %v57, 0
  %80 = vmatprep.subr.mxu0 %v74
  %81 = vmatpush1.msra.mxu0 %v72
  %82 = vmatprep.subr.mxu0 0.0
  %83 = vmatpush1.msra.mxu0 0.0
  %84 = vmatprep.subr.mxu0 0.0
  %85 = vmatpush1.msra.mxu0 0.0
  %86 = vmatprep.subr.mxu0 0.0
  %87 = vmatpush1.msra.mxu0 0.0
  %88 = vmatprep.subr.mxu0 0.0
  %89 = vmatpush1.msra.mxu0 0.0
  %90 = vmatprep.subr.mxu0 0.0
  %91 = vmatpush1.msra.mxu0 0.0
  %92 = vmatprep.subr.mxu0 0.0
  %93 = vmatpush1.msra.mxu0 0.0
  %94 = vmatprep.subr.mxu0 0.0
  %95 = vmatpush1.msra.mxu0 0.0
  %96 = vmatprep.subr.mxu0 0.0
  %97 = vmatpush1.msra.mxu0 0.0
  %98 = vmatprep.subr.mxu0 0.0
  %99 = vmatpush1.msra.mxu0 0.0
  %100 = vmatprep.subr.mxu0 0.0
  %101 = vmatpush1.msra.mxu0 0.0
  %102 = vmatprep.subr.mxu0 0.0
  %103 = vmatpush1.msra.mxu0 0.0
  %104 = vmatprep.subr.mxu0 0.0
  %105 = vmatpush1.msra.mxu0 0.0
  %106 = vmatprep.subr.mxu0 0.0
  %107 = vmatpush1.msra.mxu0 0.0
  %108 = vmatprep.subr.mxu0 0.0
  %109 = vmatpush1.msra.mxu0 0.0
  %110 = vmatprep.subr.mxu0 0.0
  %111 = vmatpush1.msra.mxu0 0.0
  %112 = vmatprep.subr.mxu0 0.0
  %113 = vmatpush1.msra.mxu0 0.0
  %114 = vmatprep.subr.mxu0 0.0
  %115 = vmatpush1.msra.mxu0 0.0
  %116 = vmatprep.subr.mxu0 0.0
  %117 = vmatpush1.msra.mxu0 0.0
  %118 = vmatprep.subr.mxu0 0.0
  %119 = vmatpush1.msra.mxu0 0.0
  %120 = vmatprep.subr.mxu0 0.0
  %121 = vmatpush1.msra.mxu0 0.0
  %122 = vmatprep.subr.mxu0 0.0
  %123 = vmatpush1.msra.mxu0 0.0
  %124 = vmatprep.subr.mxu0 0.0
  %125 = vmatpush1.msra.mxu0 0.0
  %126 = vmatprep.subr.mxu0 0.0
  %127 = vmatpush1.msra.mxu0 0.0
  %128 = vmatprep.subr.mxu0 0.0
  %129 = vmatpush1.msra.mxu0 0.0
  %130 = vmatprep.subr.mxu0 0.0
  %131 = vmatpush1.msra.mxu0 0.0
  %132 = vmatprep.subr.mxu0 0.0
  %133 = vmatpush1.msra.mxu0 0.0
  %134 = vmatprep.subr.mxu0 0.0
  %135 = vmatpush1.msra.mxu0 0.0
  %136 = vmatprep.subr.mxu0 0.0
  %137 = vmatpush1.msra.mxu0 0.0
  %138 = vmatprep.subr.mxu0 0.0
  %139 = vmatpush1.msra.mxu0 0.0
  %140 = vmatprep.subr.mxu0 0.0
  %141 = vmatpush1.msra.mxu0 0.0
  %142 = vmatprep.subr.mxu0 0.0
  %143 = vmatpush1.msra.mxu0 0.0
  %144 = vmatprep.mubr.f32.mxu0 0.0
  %145 = vmatmul.mubr.f32.gmra.mrb[0].mxu0 %v60
  %v146 = vpop.f32.mrb[0].mxu0
  %v147 = vadd.f32 0.0, %v146
  %v148 = vpop.f32.mrb[0].mxu0
  %v149 = vadd.f32 0.0, %v148
  %150 = vmatprep.mubr.f32.mxu0 0.0
  %151 = vmatmul.mubr.f32.gmra.mrb[0].mxu0 %v63
  %v152 = vpop.f32.mrb[0].mxu0
  %v153 = vadd.f32 0.0, %v152
  %v154 = vpop.f32.mrb[0].mxu0
  %v155 = vadd.f32 0.0, %v154
  %156 = vmatprep.mubr.f32.mxu0 0.0
  %157 = vmatmul.mubr.f32.gmra.mrb[0].mxu0 %v66
  %v158 = vpop.f32.mrb[0].mxu0
  %v159 = vadd.f32 0.0, %v158
  %v160 = vpop.f32.mrb[0].mxu0
  %v161 = vadd.f32 0.0, %v160
  %162 = vmatprep.mubr.f32.mxu0 0.0
  %163 = vmatmul.mubr.f32.gmra.mrb[0].mxu0 %v69
  %v164 = vpop.f32.mrb[0].mxu0
  %v165 = vadd.f32 0.0, %v164
  %v166 = vpop.f32.mrb[0].mxu0
  %v167 = vadd.f32 0.0, %v166
  %168 = vdwg.mxu0
  %169 = vmatprep.subr.mxu0 %v78
  %170 = vmatpush1.msra.mxu0 %v76
  %171 = vmatprep.subr.mxu0 0.0
  %172 = vmatpush1.msra.mxu0 0.0
  %173 = vmatprep.subr.mxu0 0.0
  %174 = vmatpush1.msra.mxu0 0.0
  %175 = vmatprep.subr.mxu0 0.0
  %176 = vmatpush1.msra.mxu0 0.0
  %177 = vmatprep.subr.mxu0 0.0
  %178 = vmatpush1.msra.mxu0 0.0
  %179 = vmatprep.subr.mxu0 0.0
  %180 = vmatpush1.msra.mxu0 0.0
  %181 = vmatprep.subr.mxu0 0.0
  %182 = vmatpush1.msra.mxu0 0.0
  %183 = vmatprep.subr.mxu0 0.0
  %184 = vmatpush1.msra.mxu0 0.0
  %185 = vmatprep.subr.mxu0 0.0
  %186 = vmatpush1.msra.mxu0 0.0
  %187 = vmatprep.subr.mxu0 0.0
  %188 = vmatpush1.msra.mxu0 0.0
  %189 = vmatprep.subr.mxu0 0.0
  %190 = vmatpush1.msra.mxu0 0.0
  %191 = vmatprep.subr.mxu0 0.0
  %192 = vmatpush1.msra.mxu0 0.0
  %193 = vmatprep.subr.mxu0 0.0
  %194 = vmatpush1.msra.mxu0 0.0
  %195 = vmatprep.subr.mxu0 0.0
  %196 = vmatpush1.msra.mxu0 0.0
  %197 = vmatprep.subr.mxu0 0.0
  %198 = vmatpush1.msra.mxu0 0.0
  %199 = vmatprep.subr.mxu0 0.0
  %200 = vmatpush1.msra.mxu0 0.0
  %201 = vmatprep.subr.mxu0 0.0
  %202 = vmatpush1.msra.mxu0 0.0
  %203 = vmatprep.subr.mxu0 0.0
  %204 = vmatpush1.msra.mxu0 0.0
  %205 = vmatprep.subr.mxu0 0.0
  %206 = vmatpush1.msra.mxu0 0.0
  %207 = vmatprep.subr.mxu0 0.0
  %208 = vmatpush1.msra.mxu0 0.0
  %209 = vmatprep.subr.mxu0 0.0
  %210 = vmatpush1.msra.mxu0 0.0
  %211 = vmatprep.subr.mxu0 0.0
  %212 = vmatpush1.msra.mxu0 0.0
  %213 = vmatprep.subr.mxu0 0.0
  %214 = vmatpush1.msra.mxu0 0.0
  %215 = vmatprep.subr.mxu0 0.0
  %216 = vmatpush1.msra.mxu0 0.0
  %217 = vmatprep.subr.mxu0 0.0
  %218 = vmatpush1.msra.mxu0 0.0
  %219 = vmatprep.subr.mxu0 0.0
  %220 = vmatpush1.msra.mxu0 0.0
  %221 = vmatprep.subr.mxu0 0.0
  %222 = vmatpush1.msra.mxu0 0.0
  %223 = vmatprep.subr.mxu0 0.0
  %224 = vmatpush1.msra.mxu0 0.0
  %225 = vmatprep.subr.mxu0 0.0
  %226 = vmatpush1.msra.mxu0 0.0
  %227 = vmatprep.subr.mxu0 0.0
  %228 = vmatpush1.msra.mxu0 0.0
  %229 = vmatprep.subr.mxu0 0.0
  %230 = vmatpush1.msra.mxu0 0.0
  %231 = vmatprep.subr.mxu0 0.0
  %232 = vmatpush1.msra.mxu0 0.0
  %233 = vmatprep.mubr.f32.mxu0 0.0
  %234 = vmatmul.mubr.f32.gmra.mrb[0].mxu0 %v60
  %v235 = vpop.f32.mrb[0].mxu0
  %v236 = vadd.f32 0.0, %v235
  %v237 = vpop.f32.mrb[0].mxu0
  %v238 = vadd.f32 0.0, %v237
  %239 = vmatprep.mubr.f32.mxu0 0.0
  %240 = vmatmul.mubr.f32.gmra.mrb[0].mxu0 %v63
  %v241 = vpop.f32.mrb[0].mxu0
  %v242 = vadd.f32 0.0, %v241
  %v243 = vpop.f32.mrb[0].mxu0
  %v244 = vadd.f32 0.0, %v243
  %245 = vmatprep.mubr.f32.mxu0 0.0
  %246 = vmatmul.mubr.f32.gmra.mrb[0].mxu0 %v66
  %v247 = vpop.f32.mrb[0].mxu0
  %v248 = vadd.f32 0.0, %v247
  %v249 = vpop.f32.mrb[0].mxu0
  %v250 = vadd.f32 0.0, %v249
  %251 = vmatprep.mubr.f32.mxu0 0.0
  %252 = vmatmul.mubr.f32.gmra.mrb[0].mxu0 %v69
  %v253 = vpop.f32.mrb[0].mxu0
  %v254 = vadd.f32 0.0, %v253
  %v255 = vpop.f32.mrb[0].mxu0
  %v256 = vadd.f32 0.0, %v255
  %257 = vdwg.mxu0
  %vm258 = vcmask 261120
  %v260 = vsel %vm258, %v25, 0
  %v263 = vsel %vm258, %v26, 0
  %265 = vmatprep.subr.mxu0 %v149
  %266 = vmatpush1.msra.mxu0 %v147
  %267 = vmatprep.subr.mxu0 %v155
  %268 = vmatpush1.msra.mxu0 %v153
  %269 = vmatprep.subr.mxu0 %v161
  %270 = vmatpush1.msra.mxu0 %v159
  %271 = vmatprep.subr.mxu0 %v167
  %272 = vmatpush1.msra.mxu0 %v165
  %273 = vmatprep.subr.mxu0 0.0
  %274 = vmatpush1.msra.mxu0 0.0
  %275 = vmatprep.subr.mxu0 0.0
  %276 = vmatpush1.msra.mxu0 0.0
  %277 = vmatprep.subr.mxu0 0.0
  %278 = vmatpush1.msra.mxu0 0.0
  %279 = vmatprep.subr.mxu0 0.0
  %280 = vmatpush1.msra.mxu0 0.0
  %281 = vmatprep.subr.mxu0 0.0
  %282 = vmatpush1.msra.mxu0 0.0
  %283 = vmatprep.subr.mxu0 0.0
  %284 = vmatpush1.msra.mxu0 0.0
  %285 = vmatprep.subr.mxu0 0.0
  %286 = vmatpush1.msra.mxu0 0.0
  %287 = vmatprep.subr.mxu0 0.0
  %288 = vmatpush1.msra.mxu0 0.0
  %289 = vmatprep.subr.mxu0 0.0
  %290 = vmatpush1.msra.mxu0 0.0
  %291 = vmatprep.subr.mxu0 0.0
  %292 = vmatpush1.msra.mxu0 0.0
  %293 = vmatprep.subr.mxu0 0.0
  %294 = vmatpush1.msra.mxu0 0.0
  %295 = vmatprep.subr.mxu0 0.0
  %296 = vmatpush1.msra.mxu0 0.0
  %297 = vmatprep.subr.mxu0 0.0
  %298 = vmatpush1.msra.mxu0 0.0
  %299 = vmatprep.subr.mxu0 0.0
  %300 = vmatpush1.msra.mxu0 0.0
  %301 = vmatprep.subr.mxu0 0.0
  %302 = vmatpush1.msra.mxu0 0.0
  %303 = vmatprep.subr.mxu0 0.0
  %304 = vmatpush1.msra.mxu0 0.0
  %305 = vmatprep.subr.mxu0 0.0
  %306 = vmatpush1.msra.mxu0 0.0
  %307 = vmatprep.subr.mxu0 0.0
  %308 = vmatpush1.msra.mxu0 0.0
  %309 = vmatprep.subr.mxu0 0.0
  %310 = vmatpush1.msra.mxu0 0.0
  %311 = vmatprep.subr.mxu0 0.0
  %312 = vmatpush1.msra.mxu0 0.0
  %313 = vmatprep.subr.mxu0 0.0
  %314 = vmatpush1.msra.mxu0 0.0
  %315 = vmatprep.subr.mxu0 0.0
  %316 = vmatpush1.msra.mxu0 0.0
  %317 = vmatprep.subr.mxu0 0.0
  %318 = vmatpush1.msra.mxu0 0.0
  %319 = vmatprep.subr.mxu0 0.0
  %320 = vmatpush1.msra.mxu0 0.0
  %321 = vmatprep.subr.mxu0 0.0
  %322 = vmatpush1.msra.mxu0 0.0
  %323 = vmatprep.subr.mxu0 0.0
  %324 = vmatpush1.msra.mxu0 0.0
  %325 = vmatprep.subr.mxu0 0.0
  %326 = vmatpush1.msra.mxu0 0.0
  %327 = vmatprep.subr.mxu0 0.0
  %328 = vmatpush1.msra.mxu0 0.0
  %329 = vmatprep.mubr.f32.mxu0 0.0
  %330 = vmatmul.mubr.f32.gmra.mrb[0].mxu0 %v260
  %v331 = vpop.f32.mrb[0].mxu0
  %v332 = vadd.f32 0.0, %v331
  %v333 = vpop.f32.mrb[0].mxu0
  %v334 = vadd.f32 0.0, %v333
  %335 = vmatprep.mubr.f32.mxu0 0.0
  %336 = vmatmul.mubr.f32.gmra.mrb[0].mxu0 %v263
  %v337 = vpop.f32.mrb[0].mxu0
  %v338 = vadd.f32 0.0, %v337
  %v339 = vpop.f32.mrb[0].mxu0
  %v340 = vadd.f32 0.0, %v339
  %341 = vdwg.mxu0
  %342 = vmatprep.subr.mxu0 %v238
  %343 = vmatpush1.msra.mxu0 %v236
  %344 = vmatprep.subr.mxu0 %v244
  %345 = vmatpush1.msra.mxu0 %v242
  %346 = vmatprep.subr.mxu0 %v250
  %347 = vmatpush1.msra.mxu0 %v248
  %348 = vmatprep.subr.mxu0 %v256
  %349 = vmatpush1.msra.mxu0 %v254
  %350 = vmatprep.subr.mxu0 0.0
  %351 = vmatpush1.msra.mxu0 0.0
  %352 = vmatprep.subr.mxu0 0.0
  %353 = vmatpush1.msra.mxu0 0.0
  %354 = vmatprep.subr.mxu0 0.0
  %355 = vmatpush1.msra.mxu0 0.0
  %356 = vmatprep.subr.mxu0 0.0
  %357 = vmatpush1.msra.mxu0 0.0
  %358 = vmatprep.subr.mxu0 0.0
  %359 = vmatpush1.msra.mxu0 0.0
  %360 = vmatprep.subr.mxu0 0.0
  %361 = vmatpush1.msra.mxu0 0.0
  %362 = vmatprep.subr.mxu0 0.0
  %363 = vmatpush1.msra.mxu0 0.0
  %364 = vmatprep.subr.mxu0 0.0
  %365 = vmatpush1.msra.mxu0 0.0
  %366 = vmatprep.subr.mxu0 0.0
  %367 = vmatpush1.msra.mxu0 0.0
  %368 = vmatprep.subr.mxu0 0.0
  %369 = vmatpush1.msra.mxu0 0.0
  %370 = vmatprep.subr.mxu0 0.0
  %371 = vmatpush1.msra.mxu0 0.0
  %372 = vmatprep.subr.mxu0 0.0
  %373 = vmatpush1.msra.mxu0 0.0
  %374 = vmatprep.subr.mxu0 0.0
  %375 = vmatpush1.msra.mxu0 0.0
  %376 = vmatprep.subr.mxu0 0.0
  %377 = vmatpush1.msra.mxu0 0.0
  %378 = vmatprep.subr.mxu0 0.0
  %379 = vmatpush1.msra.mxu0 0.0
  %380 = vmatprep.subr.mxu0 0.0
  %381 = vmatpush1.msra.mxu0 0.0
  %382 = vmatprep.subr.mxu0 0.0
  %383 = vmatpush1.msra.mxu0 0.0
  %384 = vmatprep.subr.mxu0 0.0
  %385 = vmatpush1.msra.mxu0 0.0
  %386 = vmatprep.subr.mxu0 0.0
  %387 = vmatpush1.msra.mxu0 0.0
  %388 = vmatprep.subr.mxu0 0.0
  %389 = vmatpush1.msra.mxu0 0.0
  %390 = vmatprep.subr.mxu0 0.0
  %391 = vmatpush1.msra.mxu0 0.0
  %392 = vmatprep.subr.mxu0 0.0
  %393 = vmatpush1.msra.mxu0 0.0
  %394 = vmatprep.subr.mxu0 0.0
  %395 = vmatpush1.msra.mxu0 0.0
  %396 = vmatprep.subr.mxu0 0.0
  %397 = vmatpush1.msra.mxu0 0.0
  %398 = vmatprep.subr.mxu0 0.0
  %399 = vmatpush1.msra.mxu0 0.0
  %400 = vmatprep.subr.mxu0 0.0
  %401 = vmatpush1.msra.mxu0 0.0
  %402 = vmatprep.subr.mxu0 0.0
  %403 = vmatpush1.msra.mxu0 0.0
  %404 = vmatprep.subr.mxu0 0.0
  %405 = vmatpush1.msra.mxu0 0.0
  %406 = vmatprep.mubr.f32.mxu0 0.0
  %407 = vmatmul.mubr.f32.gmra.mrb[0].mxu0 %v260
  %v408 = vpop.f32.mrb[0].mxu0
  %v409 = vadd.f32 0.0, %v408
  %v410 = vpop.f32.mrb[0].mxu0
  %v411 = vadd.f32 0.0, %v410
  %412 = vmatprep.mubr.f32.mxu0 0.0
  %413 = vmatmul.mubr.f32.gmra.mrb[0].mxu0 %v263
  %v414 = vpop.f32.mrb[0].mxu0
  %v415 = vadd.f32 0.0, %v414
  %v416 = vpop.f32.mrb[0].mxu0
  %v417 = vadd.f32 0.0, %v416
  %418 = vdwg.mxu0
  %v421 = vsub.f32 %v332, %v52
  %v422 = vsub.f32 %v334, %v56
  %v423 = vsub.f32 %v409, %v53
  %v424 = vsub.f32 %v411, %v57
  %v425 = vmul.f32 %v421, %v421
  %v426 = vmul.f32 %v422, %v422
  %v427 = vmul.f32 %v423, %v423
  %v428 = vmul.f32 %v424, %v424
  %v429 = vsel %vm71, %v425, 0.0
  %v430 = vsel %vm71, %v426, 0.0
  %v431 = vadd.f32 %v429, %v430
  %v432 = vsel %vm71, %v427, 0.0
  %v433 = vadd.f32 %v431, %v432
  %v434 = vsel %vm71, %v428, 0.0
  %v435 = vadd.f32 %v433, %v434
  %436 = vadd.xlane.f32.xlu0 %v435
  %v437 = vpop.xlane.xlu0 %436
  %v438 = vrot.slane %v437, 4
  %v439 = vadd.f32 %v437, %v438
  %v440 = vrot.slane %v439, 2
  %v441 = vadd.f32 %v439, %v440
  %v442 = vrot.slane %v441, 1
  %v443 = vadd.f32 %v441, %v442
  %s444 = vtos %v443
  %v445 = vstv %s444
  %v446 = vmul.f32 %v147, %v147
  %v447 = vmul.f32 %v149, %v149
  %v448 = vmul.f32 %v236, %v236
  %v449 = vmul.f32 %v238, %v238
  %v450 = vmul.f32 %v153, %v153
  %v451 = vmul.f32 %v155, %v155
  %v452 = vmul.f32 %v242, %v242
  %v453 = vmul.f32 %v244, %v244
  %v454 = vmul.f32 %v159, %v159
  %v455 = vmul.f32 %v161, %v161
  %v456 = vmul.f32 %v248, %v248
  %v457 = vmul.f32 %v250, %v250
  %v458 = vmul.f32 %v165, %v165
  %v459 = vmul.f32 %v167, %v167
  %v460 = vmul.f32 %v254, %v254
  %v461 = vmul.f32 %v256, %v256
  %v462 = vadd.f32 %v446, 1.0
  %v463 = vadd.f32 %v447, 1.0
  %v464 = vadd.f32 %v448, 1.0
  %v465 = vadd.f32 %v449, 1.0
  %v466 = vadd.f32 %v450, 1.0
  %v467 = vadd.f32 %v451, 1.0
  %v468 = vadd.f32 %v452, 1.0
  %v469 = vadd.f32 %v453, 1.0
  %v470 = vadd.f32 %v454, 1.0
  %v471 = vadd.f32 %v455, 1.0
  %v472 = vadd.f32 %v456, 1.0
  %v473 = vadd.f32 %v457, 1.0
  %v474 = vadd.f32 %v458, 1.0
  %v475 = vadd.f32 %v459, 1.0
  %v476 = vadd.f32 %v460, 1.0
  %v477 = vadd.f32 %v461, 1.0
  %v478 = vlog2.pop %v462
  %v479 = vmul.f32 %v478, 0.6931472
  %v480 = vlog2.pop %v463
  %v481 = vmul.f32 %v480, 0.6931472
  %v482 = vlog2.pop %v464
  %v483 = vmul.f32 %v482, 0.6931472
  %v484 = vlog2.pop %v465
  %v485 = vmul.f32 %v484, 0.6931472
  %v486 = vlog2.pop %v466
  %v487 = vmul.f32 %v486, 0.6931472
  %v488 = vlog2.pop %v467
  %v489 = vmul.f32 %v488, 0.6931472
  %v490 = vlog2.pop %v468
  %v491 = vmul.f32 %v490, 0.6931472
  %v492 = vlog2.pop %v469
  %v493 = vmul.f32 %v492, 0.6931472
  %v494 = vlog2.pop %v470
  %v495 = vmul.f32 %v494, 0.6931472
  %v496 = vlog2.pop %v471
  %v497 = vmul.f32 %v496, 0.6931472
  %v498 = vlog2.pop %v472
  %v499 = vmul.f32 %v498, 0.6931472
  %v500 = vlog2.pop %v473
  %v501 = vmul.f32 %v500, 0.6931472
  %v502 = vlog2.pop %v474
  %v503 = vmul.f32 %v502, 0.6931472
  %v504 = vlog2.pop %v475
  %v505 = vmul.f32 %v504, 0.6931472
  %v506 = vlog2.pop %v476
  %v507 = vmul.f32 %v506, 0.6931472
  %v508 = vlog2.pop %v477
  %v509 = vmul.f32 %v508, 0.6931472
  %v510 = vrcp.pop 0.6931472
  %v511 = vmul.f32 %v479, %v510
  %v512 = vmul.f32 %v481, %v510
  %v513 = vmul.f32 %v483, %v510
  %v514 = vmul.f32 %v485, %v510
  %v515 = vmul.f32 %v487, %v510
  %v516 = vmul.f32 %v489, %v510
  %v517 = vmul.f32 %v491, %v510
  %v518 = vmul.f32 %v493, %v510
  %v519 = vmul.f32 %v495, %v510
  %v520 = vmul.f32 %v497, %v510
  %v521 = vmul.f32 %v499, %v510
  %v522 = vmul.f32 %v501, %v510
  %v523 = vmul.f32 %v503, %v510
  %v524 = vmul.f32 %v505, %v510
  %v525 = vmul.f32 %v507, %v510
  %v526 = vmul.f32 %v509, %v510
  %v527 = vadd.f32 %v511, %v512
  %v528 = vadd.f32 %v527, %v513
  %v529 = vadd.f32 %v528, %v514
  %v530 = vadd.f32 %v529, %v515
  %v531 = vadd.f32 %v530, %v516
  %v532 = vadd.f32 %v531, %v517
  %v533 = vadd.f32 %v532, %v518
  %v534 = vadd.f32 %v533, %v519
  %v535 = vadd.f32 %v534, %v520
  %v536 = vadd.f32 %v535, %v521
  %v537 = vadd.f32 %v536, %v522
  %v538 = vadd.f32 %v537, %v523
  %v539 = vadd.f32 %v538, %v524
  %v540 = vadd.f32 %v539, %v525
  %v541 = vadd.f32 %v540, %v526
  %542 = vadd.xlane.f32.xlu0 %v541
  %v543 = vpop.xlane.xlu0 %542
  %v544 = vrot.slane %v543, 4
  %v545 = vadd.f32 %v543, %v544
  %v546 = vrot.slane %v545, 2
  %v547 = vadd.f32 %v545, %v546
  %v548 = vrot.slane %v547, 1
  %v549 = vadd.f32 %v547, %v548
  %s550 = vtos %v549
  %v551 = vstv %s550
  %v552 = vmax.f32 %v332, 0.0
  %v553 = vmax.f32 %v334, 0.0
  %v554 = vmax.f32 %v409, 0.0
  %v555 = vmax.f32 %v411, 0.0
  %v556 = vand.u32 2147483647, %v332
  %v557 = vand.u32 2147483647, %v334
  %v558 = vand.u32 2147483647, %v409
  %v559 = vand.u32 2147483647, %v411
  %v560 = vsub.f32 0.0, %v556
  %v561 = vsub.f32 0.0, %v557
  %v562 = vsub.f32 0.0, %v558
  %v563 = vsub.f32 0.0, %v559
  %v564 = vmul.f32 %v560, 1.442695
  %v565 = vpow.pop %v564
  %v566 = vmul.f32 %v561, 1.442695
  %v567 = vpow.pop %v566
  %v568 = vmul.f32 %v562, 1.442695
  %v569 = vpow.pop %v568
  %v570 = vmul.f32 %v563, 1.442695
  %v571 = vpow.pop %v570
  %v572 = vadd.f32 %v565, 1.0
  %v573 = vlog2.pop %v572
  %v574 = vmul.f32 %v573, 0.6931472
  %v575 = vmul.f32 -0.5, %v565
  %v576 = vadd.f32 %v575, 1.0
  %v577 = vmul.f32 %v576, %v565
  %v578 = vand.u32 2147483647, %v565
  %vm579 = vcmp.lt.f32.partialorder %v578, 0.0004427343
  %v580 = vsel %vm579, %v577, %v574
  %v581 = vadd.f32 %v567, 1.0
  %v582 = vlog2.pop %v581
  %v583 = vmul.f32 %v582, 0.6931472
  %v584 = vmul.f32 -0.5, %v567
  %v585 = vadd.f32 %v584, 1.0
  %v586 = vmul.f32 %v585, %v567
  %v587 = vand.u32 2147483647, %v567
  %vm588 = vcmp.lt.f32.partialorder %v587, 0.0004427343
  %v589 = vsel %vm588, %v586, %v583
  %v590 = vadd.f32 %v569, 1.0
  %v591 = vlog2.pop %v590
  %v592 = vmul.f32 %v591, 0.6931472
  %v593 = vmul.f32 -0.5, %v569
  %v594 = vadd.f32 %v593, 1.0
  %v595 = vmul.f32 %v594, %v569
  %v596 = vand.u32 2147483647, %v569
  %vm597 = vcmp.lt.f32.partialorder %v596, 0.0004427343
  %v598 = vsel %vm597, %v595, %v592
  %v599 = vadd.f32 %v571, 1.0
  %v600 = vlog2.pop %v599
  %v601 = vmul.f32 %v600, 0.6931472
  %v602 = vmul.f32 -0.5, %v571
  %v603 = vadd.f32 %v602, 1.0
  %v604 = vmul.f32 %v603, %v571
  %v605 = vand.u32 2147483647, %v571
  %vm606 = vcmp.lt.f32.partialorder %v605, 0.0004427343
  %v607 = vsel %vm606, %v604, %v601
  %v608 = vadd.f32 %v552, %v580
  %v609 = vadd.f32 %v553, %v589
  %v610 = vadd.f32 %v554, %v598
  %v611 = vadd.f32 %v555, %v607
  %v616 = vrot.slane %v608, 4
  %v617 = vrot.slane %v609, 4
  %v618 = vrot.slane %v610, 4
  %v619 = vrot.slane %v611, 4
  %vm624 = vcmask 1040384
  %v625 = vsel %vm624, %v616, 0.0
  %v626 = vsel %vm624, %v617, 0.0
  %v627 = vadd.f32 %v625, %v626
  %v628 = vsel %vm624, %v618, 0.0
  %v629 = vadd.f32 %v627, %v628
  %v630 = vsel %vm624, %v619, 0.0
  %v631 = vadd.f32 %v629, %v630
  %632 = vadd.xlane.f32.xlu0 %v631
  %v633 = vpop.xlane.xlu0 %632
  %v634 = vrot.slane %v633, 4
  %v635 = vadd.f32 %v633, %v634
  %v636 = vrot.slane %v635, 2
  %v637 = vadd.f32 %v635, %v636
  %v638 = vrot.slane %v637, 1
  %v639 = vadd.f32 %v637, %v638
  %s640 = vtos %v639
  %v641 = vstv %s640
  %v642 = vadd.f32 %v338, %v340
  %643 = vadd.xlane.f32.xlu0 %v642
  %v644 = vpop.xlane.xlu0 %643
  %v645 = vrcp.pop 256.0
  %v646 = vmul.f32 %v644, %v645
  %v647 = vadd.f32 %v646, %v20
  %vm648 = vcmask 23568
  %v649 = vsel %vm648, %v647, -inf
  %650 = vmax.xlane.f32.xlu0 %v649
  %v651 = vpop.xlane.xlu0 %650
  %v652 = vrot.slane %v651, 4
  %v653 = vmax.f32 %v651, %v652
  %v654 = vrot.slane %v653, 2
  %v655 = vmax.f32 %v653, %v654
  %v656 = vrot.slane %v655, 1
  %v657 = vmax.f32 %v655, %v656
  %s658 = vtos %v657
  %v659 = vstv %s658
  %v660 = vsub.f32 %v647, %v659
  %v661 = vmul.f32 %v660, 1.442695
  %v662 = vpow.pop %v661
  %664 = vrot.lane.b32.xlu0 %v662, 126
  %v665 = vpop.permute.xlu0 %664
  %vm667 = vcmask 7168
  %v668 = vsel %vm667, %v665, 0.0
  %669 = vadd.xlane.f32.xlu0 %v668
  %v670 = vpop.xlane.xlu0 %669
  %v671 = vrot.slane %v670, 4
  %v672 = vadd.f32 %v670, %v671
  %v673 = vrot.slane %v672, 2
  %v674 = vadd.f32 %v672, %v673
  %v675 = vrot.slane %v674, 1
  %v676 = vadd.f32 %v674, %v675
  %s677 = vtos %v676
  %v678 = vstv %s677
  %v679 = vlog2.pop %v678
  %v680 = vmul.f32 %v679, 0.6931472
  %v681 = vadd.f32 %v659, %v680
  %v682 = vadd.f32 %v681, 0.0
  %v683 = vadd.f32 %v415, %v417
  %684 = vadd.xlane.f32.xlu0 %v683
  %v685 = vpop.xlane.xlu0 %684
  %v686 = vmul.f32 %v685, %v645
  %v687 = vadd.f32 %v686, %v20
  %v688 = vsel %vm648, %v687, -inf
  %689 = vmax.xlane.f32.xlu0 %v688
  %v690 = vpop.xlane.xlu0 %689
  %v691 = vrot.slane %v690, 4
  %v692 = vmax.f32 %v690, %v691
  %v693 = vrot.slane %v692, 2
  %v694 = vmax.f32 %v692, %v693
  %v695 = vrot.slane %v694, 1
  %v696 = vmax.f32 %v694, %v695
  %s697 = vtos %v696
  %v698 = vstv %s697
  %v699 = vsub.f32 %v687, %v698
  %v700 = vmul.f32 %v699, 1.442695
  %v701 = vpow.pop %v700
  %703 = vrot.lane.b32.xlu0 %v701, 126
  %v704 = vpop.permute.xlu0 %703
  %v706 = vsel %vm667, %v704, 0.0
  %707 = vadd.xlane.f32.xlu0 %v706
  %v708 = vpop.xlane.xlu0 %707
  %v709 = vrot.slane %v708, 4
  %v710 = vadd.f32 %v708, %v709
  %v711 = vrot.slane %v710, 2
  %v712 = vadd.f32 %v710, %v711
  %v713 = vrot.slane %v712, 1
  %v714 = vadd.f32 %v712, %v713
  %s715 = vtos %v714
  %v716 = vstv %s715
  %v717 = vlog2.pop %v716
  %v718 = vmul.f32 %v717, 0.6931472
  %v719 = vadd.f32 %v698, %v718
  %v720 = vadd.f32 %v682, %v719
  %v721 = vsel %vm667, %v445, %v551
  %vm722 = vcmask 15360
  %v723 = vsel %vm722, %v721, %v641
  %vm724 = vcmask 23552
  %v725 = vsel %vm724, %v723, %v720
  %vm726 = vcmask 24576
  %727 = vst.msk [vmem:[%s4] sm:$0x1] %vm726, %v725
  // Predicated region
  $region18: #{generalized_rcnn_with_rate_forward.1} parent=0 // pred_check
    _
  $region19: #{generalized_rcnn_with_rate_forward.1} parent=0 // pred_check_branch
    %729 = sbr.rel (0) target = $region21
  $region20: #{generalized_rcnn_with_rate_forward.1} parent=0 // pred_region
    _
  $region21: #{generalized_rcnn_with_rate_forward.1} parent=0 // pred_fallthru
    _
  // Predicated region
  $region22: #{generalized_rcnn_with_rate_forward.1} parent=0 // pred_check
    _
  $region23: #{generalized_rcnn_with_rate_forward.1} parent=0 // pred_check_branch
    %731 = sbr.rel (0) target = $region25
  $region24: #{generalized_rcnn_with_rate_forward.1} parent=0 // pred_region
    _
  $region25: #{generalized_rcnn_with_rate_forward.1} parent=0 // pred_fallthru
    _

</llo_original>
